<compile_context>
chip_gen: v7x
topology: tpu7x:2x2x1
jax: 0.10.0
libtpu: 0.0.40
codegen_flags: <defaults>
</compile_context>

<pallas_src>
import numpy as np
import jax
import jax.numpy as jnp
from jax import lax
from jax.experimental import pallas as pl
from jax.experimental.pallas import tpu as pltpu


def _round_up(x, m):
    return ((x + m - 1) // m) * m


# -------------- fused attention-score + feature-weighting kernel --------------

def _fused_score_weight_kernel(n_ref, b_ref, a_ref, v_ref, x_ref,
                               w_out_ref, s_out_ref, acc_ref):
    # Grid = (row tiles ["parallel"], contraction tiles ["arbitrary"]).
    # acc_ref is a lane-wide (TM, 128) partial sum of A_tile * v for this row
    # tile: the per-step body is pure vmul/vadd (VALU), so the A stream is not
    # pushed through the XLU; the one cross-lane reduction happens per row tile
    # in the finalize block.
    k = pl.program_id(1)
    tk = a_ref.shape[1]              # static block width (multiple of 128)
    n_chunks = tk // 128
    n_valid = n_ref[0]               # true column count (A is NOT padded in HBM)
    col0 = k * tk

    @pl.when(k == 0)
    def _init():
        acc_ref[...] = jnp.zeros_like(acc_ref)

    def _accumulate(mask_tail):
        acc = acc_ref[...]
        for c in range(n_chunks):
            a_c = a_ref[:, c * 128:(c + 1) * 128]      # (TM, 128) lane-aligned slice
            v_c = v_ref[:, c * 128:(c + 1) * 128]      # (1, 128) -> sublane broadcast
            p = a_c * v_c
            if mask_tail:
                # Tail K block: columns >= N hold unspecified data (no padded
                # copy of A was made) -> select them to exact zero.
                cols = col0 + c * 128 + lax.broadcasted_iota(jnp.int32, (1, 128), 1)
                p = jnp.where(cols < n_valid, p, 0.0)
            acc = acc + p
        acc_ref[...] = acc

    is_tail = col0 + tk > n_valid

    @pl.when(jnp.logical_not(is_tail))
    def _fast():
        _accumulate(False)

    @pl.when(is_tail)
    def _masked():
        _accumulate(True)

    @pl.when(k == pl.num_programs(1) - 1)
    def _finalize():
        total = jnp.sum(acc_ref[...], axis=-1, keepdims=True)   # one XLU reduce / row tile
        s = jnp.tanh(total + b_ref[0])                          # (TM, 1)
        # Score output is only 4*N bytes total, the lane-sparse store is noise
        # next to streaming A; kept column-shaped.
        s_out_ref[...] = s
        w_out_ref[...] = x_ref[...] * s                         # score-weighted features


def fused_attention(adj, x, w, b, *, tm=512, tk=1024):
    """Returns (weighted (N, D), score (N,)) with
    score = tanh(adj @ (x @ w) + b), weighted = x * score[:, None]."""
    N, D = x.shape
    assert adj.shape == (N, N)
    tm = max(8, _round_up(tm, 8))
    tk = max(128, _round_up(tk, 128))

    adj_f = adj.astype(jnp.float32)
    # TODO(synk): if the normalized adjacency is stored as bf16 upstream, stream
    # it as bf16 here (halves the dominant HBM bytes, biggest win on v5e) and
    # accumulate in f32; the 1e-5 reference tolerance would need loosening.
    x_f = x.astype(jnp.float32)
    # v = X @ W : O(N*D) glue, negligible next to the O(N^2) stream over A;
    # presented to the kernel as a lane-dense (1, N) row.
    v_row = jnp.dot(x_f, jnp.asarray(w, jnp.float32).reshape(D, 1)).reshape(1, N)

    # Tile selection: sublane/lane aligned and clamped to the problem so A is
    # streamed straight from HBM with no padded/materialized copy.
    tm_eff = min(tm, _round_up(N, 8))
    tk_eff = min(tk, _round_up(N, 128))
    # v7x megacore: keep >= 2 tiles on the "parallel" row axis so both
    # TensorCores get work (harmless on single-core v5e/v6e).
    if N > 8 and pl.cdiv(N, tm_eff) < 2:
        tm_eff = max(8, _round_up(pl.cdiv(N, 2), 8))

    grid = (pl.cdiv(N, tm_eff), pl.cdiv(N, tk_eff))

    n_smem = jnp.asarray([N], jnp.int32)
    b_smem = jnp.asarray(b, jnp.float32).reshape(1)

    # VMEM budget (worst case, TM=512/TK=1024, D<=1024): A 2x2 MiB double-buffer
    # + X tile + weighted tile + (TM,128) acc  ~= 12 MiB < 32 MiB scoped limit
    # (fits v7x's 64 MiB physical VMEM with room to spare).
    weighted, score = pl.pallas_call(
        _fused_score_weight_kernel,
        out_shape=(jax.ShapeDtypeStruct((N, D), jnp.float32),
                   jax.ShapeDtypeStruct((N, 1), jnp.float32)),
        grid=grid,
        in_specs=[
            pl.BlockSpec(memory_space=pltpu.MemorySpace.SMEM),      # N (tail mask)
            pl.BlockSpec(memory_space=pltpu.MemorySpace.SMEM),      # bias scalar
            pl.BlockSpec((tm_eff, tk_eff), lambda i, k: (i, k)),    # A tile (streamed once)
            pl.BlockSpec((1, tk_eff), lambda i, k: (0, k)),         # v row tile
            pl.BlockSpec((tm_eff, D), lambda i, k: (i, 0)),         # X tile (resident over k)
        ],
        out_specs=(
            pl.BlockSpec((tm_eff, D), lambda i, k: (i, 0)),         # weighted features
            pl.BlockSpec((tm_eff, 1), lambda i, k: (i, 0)),         # scores
        ),
        scratch_shapes=[pltpu.VMEM((tm_eff, 128), jnp.float32)],    # lane-wide accumulator
        compiler_params=pltpu.CompilerParams(
            dimension_semantics=("parallel", "arbitrary"),
            vmem_limit_bytes=32 * 1024 * 1024),
    )(n_smem, b_smem, adj_f, v_row, x_f)

    return weighted, score[:, 0]


# -------------------- pooled-adjacency renormalization --------------------

_POOLED_JAX_MAX_K = 512        # below: pallas launch overhead > the math
_POOLED_PALLAS_MAX_K = 2048    # single (K,K) in+out block must fit 32 MiB scoped VMEM


def _norm_pooled_adj_kernel(a_ref, out_ref):
    # Input: (K, K) submatrix of the *normalized* input adjacency gathered at
    # the kept node indices.  Reconstruct the binary edge structure (nonzero
    # off-diagonal), add identity, then L = D^-1/2 (A_sub + I) D^-1/2.
    a = a_ref[...]
    K = a.shape[0]
    rows = lax.broadcasted_iota(jnp.int32, (K, K), 0)
    cols = lax.broadcasted_iota(jnp.int32, (K, K), 1)
    on_diag = rows == cols
    a_hat = jnp.where(on_diag, 1.0, jnp.where(a != 0.0, 1.0, 0.0))
    # a_hat is symmetric (undirected graphs) so row and column degrees agree;
    # both reductions are kept for lowering simplicity (no vector relayout) —
    # this kernel only runs on the pooled matrix, tiny vs the full-A stream.
    d_row = lax.rsqrt(jnp.sum(a_hat, axis=1, keepdims=True))   # (K, 1)
    d_col = lax.rsqrt(jnp.sum(a_hat, axis=0, keepdims=True))   # (1, K)
    out_ref[...] = a_hat * d_row * d_col


def _normalize_pooled_jax(sub):
    K = sub.shape[0]
    eye = jnp.eye(K, dtype=jnp.float32)
    a_hat = jnp.where(eye > 0, 1.0, jnp.where(sub != 0.0, 1.0, 0.0))
    d = lax.rsqrt(jnp.sum(a_hat, axis=1))
    return a_hat * d[:, None] * d[None, :]


def normalize_pooled_adjacency(sub):
    K = sub.shape[0]
    if K == 0:
        return jnp.zeros((0, 0), jnp.float32)
    if K < _POOLED_JAX_MAX_K or K > _POOLED_PALLAS_MAX_K:
        # Small pooled graphs (the common case): a pallas_call costs more than
        # the math — plain JAX.  Very large ones would exceed the 32 MiB scoped
        # VMEM limit as a single block.
        # TODO(synk): two-pass tiled kernel (degree vector, then scale) if
        # pooled graphs beyond ~2048 nodes become common.
        return _normalize_pooled_jax(sub.astype(jnp.float32))
    return pl.pallas_call(
        _norm_pooled_adj_kernel,
        out_shape=jax.ShapeDtypeStruct((K, K), jnp.float32),
        grid=(1,),
        in_specs=[pl.BlockSpec((K, K), lambda i: (0, 0))],
        out_specs=pl.BlockSpec((K, K), lambda i: (0, 0)),
        compiler_params=pltpu.CompilerParams(vmem_limit_bytes=32 * 1024 * 1024),
    )(sub.astype(jnp.float32))


# ---------------------- JAX glue (selection / gather) ----------------------

def top_rank_indices(scores, graph_sizes, keep_ratio):
    # Per-graph top-k selection; keep counts are static (graph sizes known),
    # and kept indices are re-sorted ascending to match boolean-mask order.
    # TODO(synk): variable-length boolean-mask compaction has no static-shape
    # Pallas equivalent; done as a per-graph static-k gather here.
    idx_list = []
    offset = 0
    for n in graph_sizes:
        k = int(keep_ratio * n)          # matches PyTorch: may be 0 for tiny graphs
        if k > 0:
            g = scores[offset:offset + n]
            order = jnp.argsort(-g)                 # descending by score
            keep = jnp.sort(order[:k]) + offset     # ascending node index
            idx_list.append(keep)
        offset += n
    if not idx_list:
        return jnp.zeros((0,), dtype=jnp.int32)
    return jnp.concatenate(idx_list)


def filter_adjacency_dense(adj, keep_idx):
    # Gather kept rows/cols FIRST (K*N + K*K reads instead of streaming the
    # whole dense (N, N) through a binarize pass), then binarize + add-identity
    # + renormalize fused.
    K = int(keep_idx.shape[0])
    if K == 0:   # degenerate keep_ratio guard
        return jnp.zeros((0, 0), jnp.float32)
    sub = adj[keep_idx, :][:, keep_idx]
    return normalize_pooled_adjacency(sub)


def self_attention_pooling(adj, x, graph_indicator, graph_sizes, w, b, keep_ratio):
    weighted, score = fused_attention(adj, x, w, b)        # fused Pallas kernel
    keep_idx = top_rank_indices(score, graph_sizes, keep_ratio)
    hidden = weighted[keep_idx]
    mask_graph_indicator = graph_indicator[keep_idx]
    mask_adjacency = filter_adjacency_dense(adj, keep_idx)
    return hidden, mask_graph_indicator, mask_adjacency


# ---------------------- example / smoke test ----------------------

if __name__ == "__main__":
    N_PER_GRAPH = 8
    NUM_GRAPHS = 2
    N = N_PER_GRAPH * NUM_GRAPHS       # 16 nodes total
    D = 32                             # input_dim
    KEEP_RATIO = 0.5

    key = jax.random.PRNGKey(0)
    k_x, k_adj, k_w, k_a2, k_x2, k_pool = jax.random.split(key, 6)

    # node features
    x = jax.random.normal(k_x, (N, D), dtype=jnp.float32)

    # symmetric block-diagonal binary adjacency (undirected, no self loops)
    adj0 = jnp.zeros((N, N), dtype=jnp.float32)
    gkeys = jax.random.split(k_adj, NUM_GRAPHS)
    for g in range(NUM_GRAPHS):
        n = N_PER_GRAPH
        u = (jax.random.uniform(gkeys[g], (n, n)) < 0.5).astype(jnp.float32)
        a = jnp.triu(u, 1)
        a = a + a.T
        adj0 = adj0.at[g * n:(g + 1) * n, g * n:(g + 1) * n].set(a)

    # the forward receives an already-normalized adjacency: D^-1/2 (A+I) D^-1/2
    a_hat = adj0 + jnp.eye(N, dtype=jnp.float32)
    d = jnp.power(jnp.sum(a_hat, axis=1), -0.5)
    adj = (d[:, None] * a_hat * d[None, :]).astype(jnp.float32)

    graph_indicator = jnp.asarray(
        np.repeat(np.arange(NUM_GRAPHS), N_PER_GRAPH).astype(np.int32))
    graph_sizes = [N_PER_GRAPH] * NUM_GRAPHS

    # GraphConvolution(input_dim=D, output_dim=1) params:
    # kaiming-uniform-style weight, zero bias (deterministic, in-script).
    bound = float(np.sqrt(6.0 / D))
    w = jax.random.uniform(k_w, (D, 1), minval=-bound, maxval=bound,
                           dtype=jnp.float32)
    b = jnp.zeros((1,), dtype=jnp.float32)

    hidden, mask_graph_indicator, mask_adjacency = self_attention_pooling(
        adj, x, graph_indicator, graph_sizes, w, b, KEEP_RATIO)
    jax.block_until_ready((hidden, mask_graph_indicator, mask_adjacency))

    # --- reference checks (pure JAX) for the fused kernel semantics ---
    ref_score = jnp.tanh(adj @ (x @ w) + b)[:, 0]
    ref_weighted = x * ref_score[:, None]
    got_weighted, got_score = fused_attention(adj, x, w, b)
    np.testing.assert_allclose(np.asarray(got_score), np.asarray(ref_score),
                               rtol=1e-5, atol=1e-5)
    np.testing.assert_allclose(np.asarray(got_weighted), np.asarray(ref_weighted),
                               rtol=1e-5, atol=1e-5)

    # non-tile-multiple N exercises the in-kernel tail-column mask, the
    # multi-K-block fast+masked paths and partial row tiles (no padded A copy).
    N2 = 300
    adj2 = jax.random.uniform(k_a2, (N2, N2), dtype=jnp.float32) * (2.0 / N2)
    x2 = jax.random.normal(k_x2, (N2, D), dtype=jnp.float32)
    b2 = jnp.asarray([0.1], jnp.float32)
    ref_s2 = jnp.tanh(adj2 @ (x2 @ w) + b2)[:, 0]
    ref_w2 = x2 * ref_s2[:, None]
    for tiles in ((512, 1024), (128, 256)):      # default tiles + small tiles
        got_w2, got_s2 = fused_attention(adj2, x2, w, b2, tm=tiles[0], tk=tiles[1])
        np.testing.assert_allclose(np.asarray(got_s2), np.asarray(ref_s2),
                                   rtol=1e-5, atol=1e-5)
        np.testing.assert_allclose(np.asarray(got_w2), np.asarray(ref_w2),
                                   rtol=1e-5, atol=1e-5)

    # exercise the Pallas pooled-renorm path (only used for large pooled K).
    Kt = 640
    m = (jax.random.uniform(k_pool, (Kt, Kt)) < 0.02).astype(jnp.float32)
    m = jnp.triu(m, 1)
    sub_big = (m + m.T) * 0.37
    got_norm = normalize_pooled_adjacency(sub_big)
    ref_norm = _normalize_pooled_jax(sub_big)
    np.testing.assert_allclose(np.asarray(got_norm), np.asarray(ref_norm),
                               rtol=1e-5, atol=1e-5)

    assert hidden.shape == (NUM_GRAPHS * int(KEEP_RATIO * N_PER_GRAPH), D)
    assert mask_adjacency.shape == (hidden.shape[0], hidden.shape[0])
    print("KERNEL_OK")
</pallas_src>

<mosaic_0001>
module attributes {stable_mosaic.version = 11 : i64} {
  func.func @_fused_score_weight_kernel(%arg0: i32, %arg1: i32, %arg2: memref<1xi32, #tpu.memory_space<smem>>, %arg3: memref<1xf32, #tpu.memory_space<smem>>, %arg4: memref<8x128xf32, #tpu.memory_space<vmem>>, %arg5: memref<1x128xf32, #tpu.memory_space<vmem>>, %arg6: memref<8x32xf32, #tpu.memory_space<vmem>>, %arg7: memref<8x32xf32, #tpu.memory_space<vmem>>, %arg8: memref<8x1xf32, #tpu.memory_space<vmem>>, %arg9: memref<8x128xf32, #tpu.memory_space<vmem>>) attributes {dimension_semantics = [#tpu.dimension_semantics<parallel>, #tpu.dimension_semantics<arbitrary>], iteration_bounds = array<i64: 2, 1>, scalar_prefetch = 0 : i64, scratch_operands = 1 : i64, tpu.core_type = #tpu.core_type<tc>, window_params = [{transform_indices = @transform_0, window_bounds = array<i64: 1>}, {transform_indices = @transform_1, window_bounds = array<i64: 1>}, {transform_indices = @transform_2, window_bounds = array<i64: 8, 128>}, {transform_indices = @transform_3, window_bounds = array<i64: 1, 128>}, {transform_indices = @transform_4, window_bounds = array<i64: 8, 32>}, {transform_indices = @transform_5, window_bounds = array<i64: 8, 32>}, {transform_indices = @transform_6, window_bounds = array<i64: 8, 1>}]} {
    %c0 = arith.constant 0 : index
    %0 = memref.load %arg2[%c0] : memref<1xi32, #tpu.memory_space<smem>>
    %c128_i32 = arith.constant 128 : i32
    %1 = arith.muli %arg1, %c128_i32 : i32
    %c0_i32 = arith.constant 0 : i32
    %2 = arith.cmpi eq, %arg1, %c0_i32 : i32
    %3 = arith.extui %2 : i1 to i32
    %c0_i32_0 = arith.constant 0 : i32
    %4 = arith.cmpi ne, %3, %c0_i32_0 : i32
    scf.if %4 {
      %cst = arith.constant 0.000000e+00 : f32
      %15 = vector.broadcast %cst : f32 to vector<8x128xf32>
      %c0_6 = arith.constant 0 : index
      %c0_7 = arith.constant 0 : index
      %16 = vector.load %arg9[%c0_6, %c0_7] : memref<8x128xf32, #tpu.memory_space<vmem>>, vector<8x128xf32>
      tpu.vector_store %arg9[%c0_6, %c0_7], %15 {strides = array<i32>} : memref<8x128xf32, #tpu.memory_space<vmem>>, vector<8x128xf32>,
    } else {
    }
    %c128_i32_1 = arith.constant 128 : i32
    %5 = arith.addi %1, %c128_i32_1 : i32
    %6 = arith.cmpi sgt, %5, %0 : i32
    %true = arith.constant true
    %7 = arith.xori %6, %true : i1
    %8 = arith.extui %7 : i1 to i32
    %c0_i32_2 = arith.constant 0 : i32
    %9 = arith.cmpi ne, %8, %c0_i32_2 : i32
    scf.if %9 {
      %c0_6 = arith.constant 0 : index
      %c0_7 = arith.constant 0 : index
      %15 = vector.load %arg9[%c0_6, %c0_7] : memref<8x128xf32, #tpu.memory_space<vmem>>, vector<8x128xf32>
      %c0_8 = arith.constant 0 : index
      %c0_9 = arith.constant 0 : index
      %16 = vector.load %arg4[%c0_8, %c0_9] : memref<8x128xf32, #tpu.memory_space<vmem>>, vector<8x128xf32>
      %c0_10 = arith.constant 0 : index
      %c0_11 = arith.constant 0 : index
      %17 = vector.load %arg5[%c0_10, %c0_11] : memref<1x128xf32, #tpu.memory_space<vmem>>, vector<1x128xf32>
      %18 = vector.broadcast %17 : vector<1x128xf32> to vector<8x128xf32>
      %19 = arith.mulf %16, %18 : vector<8x128xf32>
      %20 = arith.addf %15, %19 : vector<8x128xf32>
      %c0_12 = arith.constant 0 : index
      %c0_13 = arith.constant 0 : index
      %21 = vector.load %arg9[%c0_12, %c0_13] : memref<8x128xf32, #tpu.memory_space<vmem>>, vector<8x128xf32>
      tpu.vector_store %arg9[%c0_12, %c0_13], %20 {strides = array<i32>} : memref<8x128xf32, #tpu.memory_space<vmem>>, vector<8x128xf32>,
    } else {
    }
    %10 = arith.extui %6 : i1 to i32
    %c0_i32_3 = arith.constant 0 : i32
    %11 = arith.cmpi ne, %10, %c0_i32_3 : i32
    scf.if %11 {
      %c0_6 = arith.constant 0 : index
      %c0_7 = arith.constant 0 : index
      %15 = vector.load %arg9[%c0_6, %c0_7] : memref<8x128xf32, #tpu.memory_space<vmem>>, vector<8x128xf32>
      %c0_8 = arith.constant 0 : index
      %c0_9 = arith.constant 0 : index
      %16 = vector.load %arg4[%c0_8, %c0_9] : memref<8x128xf32, #tpu.memory_space<vmem>>, vector<8x128xf32>
      %c0_10 = arith.constant 0 : index
      %c0_11 = arith.constant 0 : index
      %17 = vector.load %arg5[%c0_10, %c0_11] : memref<1x128xf32, #tpu.memory_space<vmem>>, vector<1x128xf32>
      %18 = vector.broadcast %17 : vector<1x128xf32> to vector<8x128xf32>
      %19 = arith.mulf %16, %18 : vector<8x128xf32>
      %c0_i32_12 = arith.constant 0 : i32
      %20 = arith.addi %1, %c0_i32_12 : i32
      %21 = tpu.iota {dimensions = array<i32: 1>} : vector<1x128xi32>
      %22 = vector.broadcast %20 : i32 to vector<1x128xi32>
      %23 = arith.addi %22, %21 : vector<1x128xi32>
      %24 = vector.broadcast %0 : i32 to vector<1x128xi32>
      %25 = arith.cmpi slt, %23, %24 : vector<1x128xi32>
      %cst = arith.constant 0.000000e+00 : f32
      %26 = vector.shape_cast %25 : vector<1x128xi1> to vector<1x128xi1>
      %27 = vector.broadcast %26 : vector<1x128xi1> to vector<8x128xi1>
      %28 = vector.broadcast %cst : f32 to vector<8x128xf32>
      %29 = arith.select %27, %19, %28 : vector<8x128xi1>, vector<8x128xf32>
      %30 = arith.addf %15, %29 : vector<8x128xf32>
      %c0_13 = arith.constant 0 : index
      %c0_14 = arith.constant 0 : index
      %31 = vector.load %arg9[%c0_13, %c0_14] : memref<8x128xf32, #tpu.memory_space<vmem>>, vector<8x128xf32>
      tpu.vector_store %arg9[%c0_13, %c0_14], %30 {strides = array<i32>} : memref<8x128xf32, #tpu.memory_space<vmem>>, vector<8x128xf32>,
    } else {
    }
    %c0_i32_4 = arith.constant 0 : i32
    %12 = arith.cmpi eq, %arg1, %c0_i32_4 : i32
    %13 = arith.extui %12 : i1 to i32
    %c0_i32_5 = arith.constant 0 : i32
    %14 = arith.cmpi ne, %13, %c0_i32_5 : i32
    scf.if %14 {
      %c0_6 = arith.constant 0 : index
      %c0_7 = arith.constant 0 : index
      %15 = vector.load %arg9[%c0_6, %c0_7] : memref<8x128xf32, #tpu.memory_space<vmem>>, vector<8x128xf32>
      %cst = arith.constant dense<0.000000e+00> : vector<8xf32>
      %16 = vector.multi_reduction <add>, %15, %cst [1] : vector<8x128xf32> to vector<8xf32>
      %17 = vector.shape_cast %16 : vector<8xf32> to vector<8x1xf32>
      %c0_8 = arith.constant 0 : index
      %18 = memref.load %arg3[%c0_8] : memref<1xf32, #tpu.memory_space<smem>>
      %19 = vector.broadcast %18 : f32 to vector<8x1xf32>
      %20 = arith.addf %17, %19 : vector<8x1xf32>
      %21 = math.tanh %20 : vector<8x1xf32>
      %c0_9 = arith.constant 0 : index
      %c0_10 = arith.constant 0 : index
      %22 = vector.load %arg8[%c0_9, %c0_10] : memref<8x1xf32, #tpu.memory_space<vmem>>, vector<8x1xf32>
      tpu.vector_store %arg8[%c0_9, %c0_10], %21 {strides = array<i32>} : memref<8x1xf32, #tpu.memory_space<vmem>>, vector<8x1xf32>,
      %c0_11 = arith.constant 0 : index
      %c0_12 = arith.constant 0 : index
      %23 = vector.load %arg6[%c0_11, %c0_12] : memref<8x32xf32, #tpu.memory_space<vmem>>, vector<8x32xf32>
      %24 = vector.broadcast %21 : vector<8x1xf32> to vector<8x32xf32>
      %25 = arith.mulf %23, %24 : vector<8x32xf32>
      %c0_13 = arith.constant 0 : index
      %c0_14 = arith.constant 0 : index
      %26 = vector.load %arg7[%c0_13, %c0_14] : memref<8x32xf32, #tpu.memory_space<vmem>>, vector<8x32xf32>
      tpu.vector_store %arg7[%c0_13, %c0_14], %25 {strides = array<i32>} : memref<8x32xf32, #tpu.memory_space<vmem>>, vector<8x32xf32>,
    } else {
    }
    return
  }
  func.func @transform_0(%arg0: i32, %arg1: i32) -> i32 {
    %c0_i32 = arith.constant 0 : i32
    %c0_i32_0 = arith.constant 0 : i32
    return %c0_i32 : i32
  }
  func.func @transform_1(%arg0: i32, %arg1: i32) -> i32 {
    %c0_i32 = arith.constant 0 : i32
    %c0_i32_0 = arith.constant 0 : i32
    return %c0_i32 : i32
  }
  func.func @transform_2(%arg0: i32, %arg1: i32) -> (i32, i32) {
    %c0_i32 = arith.constant 0 : i32
    return %arg0, %arg1 : i32, i32
  }
  func.func @transform_3(%arg0: i32, %arg1: i32) -> (i32, i32) {
    %c0_i32 = arith.constant 0 : i32
    %c0_i32_0 = arith.constant 0 : i32
    return %c0_i32, %arg1 : i32, i32
  }
  func.func @transform_4(%arg0: i32, %arg1: i32) -> (i32, i32) {
    %c0_i32 = arith.constant 0 : i32
    %c0_i32_0 = arith.constant 0 : i32
    return %arg0, %c0_i32 : i32, i32
  }
  func.func @transform_5(%arg0: i32, %arg1: i32) -> (i32, i32) {
    %c0_i32 = arith.constant 0 : i32
    %c0_i32_0 = arith.constant 0 : i32
    return %arg0, %c0_i32 : i32, i32
  }
  func.func @transform_6(%arg0: i32, %arg1: i32) -> (i32, i32) {
    %c0_i32 = arith.constant 0 : i32
    %c0_i32_0 = arith.constant 0 : i32
    return %arg0, %c0_i32 : i32, i32
  }
}

</mosaic_0001>

<llo_original>
// kernel: tpu_custom_call.1
$region0: #{tpu_custom_call.1}
  #allocation0 [shape = 'u32[]', space=smem, size = 0x4, offset = 0x4, fixed_abs, tag = 'smem constant byte address 0x4 - core index']
  #allocation1 [shape = 'u32[144,128]{1,0:T(1,128)}', space=vmem, size = 0x12000, scoped, tag = 'internal scratch']
  #allocation2 [shape = 'f32[8,128]{1,0:T(8,128)}', space=vmem, size = 0x1000, scoped, tag = 'scratch operand']
  #allocation3 [shape = 's32[1]{0:T(128)S(6)}', space=smem, size = 0x200, scoped, tag = 'scoped memory for tpu_custom_call.1']
  #allocation4 [shape = 'f32[1]{0:T(128)S(6)}', space=smem, size = 0x200, scoped, tag = 'scoped memory for tpu_custom_call.1']
  %s0 = inlined_call_operand.<no memory space> [shape: s32[1], index: 0, kind: input, shape index: {}]
  %s1 = inlined_call_operand.<no memory space> [shape: f32[1], index: 1, kind: input, shape index: {}]
  %s2 = inlined_call_operand.hbm [shape: f32[16,16], index: 2, kind: input, shape index: {}]
  %s3 = inlined_call_operand.vmem [shape: f32[1,16], index: 3, kind: input, shape index: {}]
  %s4 = inlined_call_operand.hbm [shape: f32[16,32], index: 4, kind: input, shape index: {}]
  %s5 = inlined_call_operand.hbm [shape: f32[16,32], index: 5, kind: output, shape index: {0}]
  %s6 = inlined_call_operand.vmem [shape: f32[16,1], index: 6, kind: output, shape index: {1}]
  %7 = xla_tuple %s5, %s6
  %s8 = sld [smem:[#allocation0]]
  $region85: #{tpu_custom_call.1} parent=0
    _
  %s10 = ssub.s32 1, %s8
  %s11 = scalar_select 0, %s10, %s8
  %12 = sst [smem:[#allocation3]] %s0
  %13 = sst [smem:[#allocation4]] %s1
  $region1: #{tpu_custom_call.1} parent=0
    #allocation5 [shape = 'u8[8192]{0}', space=vmem, size = 0x2000, scoped, tag = 'input window, operand 2']
    #allocation6 [shape = 's32[2]{0}', space=sflag, size = 0x8, scoped, tag = 'scoped memory for tpu_custom_call.1']
    #allocation7 [shape = 's32[2]{0}', space=sflag, size = 0x8, scoped, tag = 'scoped memory for tpu_custom_call.1']
    #allocation8 [shape = 'u8[8192]{0}', space=vmem, size = 0x2000, scoped, tag = 'input window, operand 4']
    #allocation9 [shape = 's32[2]{0}', space=sflag, size = 0x8, scoped, tag = 'scoped memory for tpu_custom_call.1']
    #allocation10 [shape = 'u8[8192]{0}', space=vmem, size = 0x2000, scoped, tag = 'output window, operand 0']
    %14 = vsyncpa [#allocation6], 0
    %s15 = scalar_lea.sflag [#allocation6], 1
    %16 = vsyncpa %s15, 0
    %17 = vsyncpa [#allocation9], 0
    %s18 = scalar_lea.sflag [#allocation9], 1
    %19 = vsyncpa %s18, 0
    %20 = vsyncpa [#allocation7], 0
    %s21 = scalar_lea.sflag [#allocation7], 1
    %22 = vsyncpa %s21, 0
    loop: start=0, step=1, limit=4
    $region2: #{tpu_custom_call.1} parent=1 // loop_pre_header
      _
    $region3: #{tpu_custom_call.1} parent=1 // loop_header
      %s24 = sphi 0, %s28
      %p25 = scmp.ge.s32.totalorder %s24, 4
      %s31 = sphi 0, %s43
      %s32 = sphi 0, %s39
      %s33 = sphi 0, %s31
      %s34 = sphi 0, %s32
      %s35 = sphi 0, %s33
      %s36 = sphi 0, %s34
      %s44 = sphi 0, %s44
      %s46 = sphi 0, %s44
      %s47 = sphi 0, %s46
      %s61 = sphi 0, %s47
      %s65 = sphi 0, %s65
      %s67 = sphi 0, %s65
      %s68 = sphi 0, %s67
      %s82 = sphi 0, %s68
      %s90 = sphi 0, %s92
      %s93 = sphi 0, %s90
      %s94 = sphi 0, %s93
      %s110 = sphi 0, %s94
      %s116 = sphi 0, %s118
      %s119 = sphi 0, %s116
      %s120 = sphi 0, %s119
      %s136 = sphi 0, %s120
      %s142 = sphi 0, %s144
      %s145 = sphi 0, %s142
      %s146 = sphi 0, %s145
      %s162 = sphi 0, %s146
      %s168 = sphi 0, %s170
      %s171 = sphi 0, %s168
      %s172 = sphi 0, %s171
      %s188 = sphi 0, %s172
      %s194 = sphi 0, %s196
      %s197 = sphi 0, %s194
      %s198 = sphi 0, %s197
      %s214 = sphi 0, %s198
    $region4: #{tpu_custom_call.1} parent=1 // loop_header_branch
      %27 = sbr.rel (%p25) target = $region8
    $region5: #{tpu_custom_call.1} parent=1 // loop_body
      %s29 = ssub.s32 %s24, 1
      %s30 = ssub.s32 %s24, 2
      %s37 = sadd.s32 1, %s32
      %p38 = scmp.ge.s32.totalorder %s37, 1
      %s39 = scalar_select %p38, 0, %s37
      %s40 = sadd.s32 1, %s31
      %s41 = scalar_select %p38, %s40, %s31
      %p42 = scmp.ge.s32.totalorder %s41, 2
      %s43 = scalar_select %p42, 0, %s41
      %s45 = sadd.s32 %s44, 1
      %p48 = scmp.eq.s32.totalorder %s24, 1
      %p49 = scmp.ne.s32.totalorder %s44, %s46
      %p50 = scmp.eq.s32.totalorder %s24, 0
      %p51 = por %p49, %p50
      %p52 = scmp.ne.s32.totalorder %s44, %s46
      %p53 = scmp.eq.s32.totalorder %s29, 1
      %p54 = por %p52, %p53
      %p55 = scmp.ne.s32.totalorder %s46, %s47
      %p56 = scmp.eq.s32.totalorder %s29, 0
      %p57 = por %p55, %p56
      %p58 = scmp.ne.s32.totalorder %s46, %s47
      %p59 = scmp.eq.s32.totalorder %s30, 1
      %p60 = por %p58, %p59
      %p62 = scmp.ne.s32.totalorder %s47, %s61
      %p63 = scmp.eq.s32.totalorder %s30, 0
      %p64 = por %p62, %p63
      %s66 = sadd.s32 %s65, 1
      %p69 = scmp.eq.s32.totalorder %s24, 1
      %p70 = scmp.ne.s32.totalorder %s65, %s67
      %p71 = scmp.eq.s32.totalorder %s24, 0
      %p72 = por %p70, %p71
      %p73 = scmp.ne.s32.totalorder %s65, %s67
      %p74 = scmp.eq.s32.totalorder %s29, 1
      %p75 = por %p73, %p74
      %p76 = scmp.ne.s32.totalorder %s67, %s68
      %p77 = scmp.eq.s32.totalorder %s29, 0
      %p78 = por %p76, %p77
      %p79 = scmp.ne.s32.totalorder %s67, %s68
      %p80 = scmp.eq.s32.totalorder %s30, 1
      %p81 = por %p79, %p80
      %p83 = scmp.ne.s32.totalorder %s68, %s82
      %p84 = scmp.eq.s32.totalorder %s30, 0
      %p85 = por %p83, %p84
      %s86 = ssub.s32 %s31, %s43
      %s87 = ssub.s32 %s32, %s39
      %s88 = sor.u32 %s86, %s87
      %p89 = scmp.eq.s32.totalorder %s88, 0
      %s91 = sadd.s32 %s90, 1
      %s92 = scalar_select %p89, %s90, %s91
      %p95 = pneg %p89
      %p96 = scmp.eq.s32.totalorder %s24, 1
      %p97 = por %p95, %p96
      %p98 = scmp.ne.s32.totalorder %s90, %s93
      %p99 = scmp.eq.s32.totalorder %s24, 0
      %p100 = por %p98, %p99
      %p101 = scmp.ne.s32.totalorder %s90, %s93
      %p102 = scmp.eq.s32.totalorder %s29, 1
      %p103 = por %p101, %p102
      %p104 = scmp.ne.s32.totalorder %s93, %s94
      %p105 = scmp.eq.s32.totalorder %s29, 0
      %p106 = por %p104, %p105
      %p107 = scmp.ne.s32.totalorder %s93, %s94
      %p108 = scmp.eq.s32.totalorder %s30, 1
      %p109 = por %p107, %p108
      %p111 = scmp.ne.s32.totalorder %s94, %s110
      %p112 = scmp.eq.s32.totalorder %s30, 0
      %p113 = por %p111, %p112
      %s114 = ssub.s32 %s32, %s39
      %p115 = scmp.eq.s32.totalorder %s114, 0
      %s117 = sadd.s32 %s116, 1
      %s118 = scalar_select %p115, %s116, %s117
      %p121 = pneg %p115
      %p122 = scmp.eq.s32.totalorder %s24, 1
      %p123 = por %p121, %p122
      %p124 = scmp.ne.s32.totalorder %s116, %s119
      %p125 = scmp.eq.s32.totalorder %s24, 0
      %p126 = por %p124, %p125
      %p127 = scmp.ne.s32.totalorder %s116, %s119
      %p128 = scmp.eq.s32.totalorder %s29, 1
      %p129 = por %p127, %p128
      %p130 = scmp.ne.s32.totalorder %s119, %s120
      %p131 = scmp.eq.s32.totalorder %s29, 0
      %p132 = por %p130, %p131
      %p133 = scmp.ne.s32.totalorder %s119, %s120
      %p134 = scmp.eq.s32.totalorder %s30, 1
      %p135 = por %p133, %p134
      %p137 = scmp.ne.s32.totalorder %s120, %s136
      %p138 = scmp.eq.s32.totalorder %s30, 0
      %p139 = por %p137, %p138
      %s140 = ssub.s32 %s31, %s43
      %p141 = scmp.eq.s32.totalorder %s140, 0
      %s143 = sadd.s32 %s142, 1
      %s144 = scalar_select %p141, %s142, %s143
      %p147 = pneg %p141
      %p148 = scmp.eq.s32.totalorder %s24, 1
      %p149 = por %p147, %p148
      %p150 = scmp.ne.s32.totalorder %s142, %s145
      %p151 = scmp.eq.s32.totalorder %s24, 0
      %p152 = por %p150, %p151
      %p153 = scmp.ne.s32.totalorder %s142, %s145
      %p154 = scmp.eq.s32.totalorder %s29, 1
      %p155 = por %p153, %p154
      %p156 = scmp.ne.s32.totalorder %s145, %s146
      %p157 = scmp.eq.s32.totalorder %s29, 0
      %p158 = por %p156, %p157
      %p159 = scmp.ne.s32.totalorder %s145, %s146
      %p160 = scmp.eq.s32.totalorder %s30, 1
      %p161 = por %p159, %p160
      %p163 = scmp.ne.s32.totalorder %s146, %s162
      %p164 = scmp.eq.s32.totalorder %s30, 0
      %p165 = por %p163, %p164
      %s166 = ssub.s32 %s31, %s43
      %p167 = scmp.eq.s32.totalorder %s166, 0
      %s169 = sadd.s32 %s168, 1
      %s170 = scalar_select %p167, %s168, %s169
      %p173 = pneg %p167
      %p174 = scmp.eq.s32.totalorder %s24, 1
      %p175 = por %p173, %p174
      %p176 = scmp.ne.s32.totalorder %s168, %s171
      %p177 = scmp.eq.s32.totalorder %s24, 0
      %p178 = por %p176, %p177
      %p179 = scmp.ne.s32.totalorder %s168, %s171
      %p180 = scmp.eq.s32.totalorder %s29, 1
      %p181 = por %p179, %p180
      %p182 = scmp.ne.s32.totalorder %s171, %s172
      %p183 = scmp.eq.s32.totalorder %s29, 0
      %p184 = por %p182, %p183
      %p185 = scmp.ne.s32.totalorder %s171, %s172
      %p186 = scmp.eq.s32.totalorder %s30, 1
      %p187 = por %p185, %p186
      %p189 = scmp.ne.s32.totalorder %s172, %s188
      %p190 = scmp.eq.s32.totalorder %s30, 0
      %p191 = por %p189, %p190
      %s192 = ssub.s32 %s31, %s43
      %p193 = scmp.eq.s32.totalorder %s192, 0
      %s195 = sadd.s32 %s194, 1
      %s196 = scalar_select %p193, %s194, %s195
      %p199 = pneg %p193
      %p200 = scmp.eq.s32.totalorder %s24, 1
      %p201 = por %p199, %p200
      %p202 = scmp.ne.s32.totalorder %s194, %s197
      %p203 = scmp.eq.s32.totalorder %s24, 0
      %p204 = por %p202, %p203
      %p205 = scmp.ne.s32.totalorder %s194, %s197
      %p206 = scmp.eq.s32.totalorder %s29, 1
      %p207 = por %p205, %p206
      %p208 = scmp.ne.s32.totalorder %s197, %s198
      %p209 = scmp.eq.s32.totalorder %s29, 0
      %p210 = por %p208, %p209
      %p211 = scmp.ne.s32.totalorder %s197, %s198
      %p212 = scmp.eq.s32.totalorder %s30, 1
      %p213 = por %p211, %p212
      %p215 = scmp.ne.s32.totalorder %s198, %s214
      %p216 = scmp.eq.s32.totalorder %s30, 0
      %p217 = por %p215, %p216
      %p218 = scmp.le.s32.totalorder 1, %s24
      %p219 = scmp.lt.s32.totalorder %s24, 3
      %p220 = pnand %p218, %p219
      %p221 = pneg %p220
      // Predicated region
      $region9: #{tpu_custom_call.1} parent=5 // pred_check
        _
      $region10: #{tpu_custom_call.1} parent=5 // pred_check_branch
        %223 = sbr.rel (%p220) target = $region12
      $region11: #{tpu_custom_call.1} parent=5 // pred_region
        %s224 = ssub.s32 %s24, 1
        // Predicated region
        $region13: #{tpu_custom_call.1} parent=11 // pred_check
          %p225 = pneg %p57
        $region14: #{tpu_custom_call.1} parent=11 // pred_check_branch
          %227 = sbr.rel (%p225) target = $region16
        $region15: #{tpu_custom_call.1} parent=11 // pred_region
          _
        $region16: #{tpu_custom_call.1} parent=11 // pred_fallthru
          _
        // Predicated region
        $region17: #{tpu_custom_call.1} parent=11 // pred_check
          %p228 = pneg %p78
        $region18: #{tpu_custom_call.1} parent=11 // pred_check_branch
          %230 = sbr.rel (%p228) target = $region20
        $region19: #{tpu_custom_call.1} parent=11 // pred_region
          _
        $region20: #{tpu_custom_call.1} parent=11 // pred_fallthru
          _
        // Predicated region
        $region21: #{tpu_custom_call.1} parent=11 // pred_check
          %p231 = pneg %p132
        $region22: #{tpu_custom_call.1} parent=11 // pred_check_branch
          %233 = sbr.rel (%p231) target = $region24
        $region23: #{tpu_custom_call.1} parent=11 // pred_region
          %p234 = scmp.lt.s32.totalorder %s34, 0
          %s235 = scalar_select %p234, %s34, 0
          %s236 = scalar_lea.vmem %s3, %s235
        $region24: #{tpu_custom_call.1} parent=11 // pred_fallthru
          _
      $region12: #{tpu_custom_call.1} parent=5 // pred_fallthru
        _
      %p237 = scmp.lt.s32.totalorder %s24, 2
      // Predicated region
      $region25: #{tpu_custom_call.1} parent=5 // pred_check
        %p238 = pneg %p237
      $region26: #{tpu_custom_call.1} parent=5 // pred_check_branch
        %240 = sbr.rel (%p238) target = $region28
      $region27: #{tpu_custom_call.1} parent=5 // pred_region
        // Predicated region
        $region29: #{tpu_custom_call.1} parent=27 // pred_check
          %p241 = pneg %p100
        $region30: #{tpu_custom_call.1} parent=27 // pred_check_branch
          %243 = sbr.rel (%p241) target = $region32
        $region31: #{tpu_custom_call.1} parent=27 // pred_region
          %s244 = sand.u32 %s90, 1
          %s245 = scalar_lea.sflag [#allocation6], %s244
          %s246 = sand.u32 %s90, 1
          %s247 = smul.addr %s246, 8
          %s248 = scalar_lea.vmem [#allocation5], %s247
          %s250 = ssub.s32 128, 128
          %251 = vsyncadd %s245, %s250
          %s252 = sadd.s32 %s32, %s31
          %s253 = smul.addr %s252, 128
          %s254 = scalar_lea.hbm %s2, %s253
          %s256 = sshll.u32 %s248, 4
          %s257 = int_to_ptr.vmem [resolvable:$true] %s256
          %259 = dma.hbm_to_vmem [thread:$0]  %s254, 128, %s257, %s245
        $region32: #{tpu_custom_call.1} parent=27 // pred_fallthru
          _
        // Predicated region
        $region33: #{tpu_custom_call.1} parent=27 // pred_check
          %p260 = pneg %p152
        $region34: #{tpu_custom_call.1} parent=27 // pred_check_branch
          %262 = sbr.rel (%p260) target = $region36
        $region35: #{tpu_custom_call.1} parent=27 // pred_region
          %s263 = sand.u32 %s142, 1
          %s264 = scalar_lea.sflag [#allocation9], %s263
          %s265 = sand.u32 %s142, 1
          %s266 = smul.addr %s265, 8
          %s267 = scalar_lea.vmem [#allocation8], %s266
          %s269 = ssub.s32 128, 128
          %270 = vsyncadd %s264, %s269
          %s271 = smul.addr %s31, 128
          %s272 = scalar_lea.hbm %s4, %s271
          %s274 = sshll.u32 %s267, 4
          %s275 = int_to_ptr.vmem [resolvable:$true] %s274
          %277 = dma.hbm_to_vmem [thread:$0]  %s272, 128, %s275, %s264
        $region36: #{tpu_custom_call.1} parent=27 // pred_fallthru
          _
      $region28: #{tpu_custom_call.1} parent=5 // pred_fallthru
        _
      %p278 = scmp.le.s32.totalorder 1, %s24
      %p279 = scmp.lt.s32.totalorder %s24, 3
      %p280 = pnand %p278, %p279
      %p281 = pneg %p280
      // Predicated region
      $region37: #{tpu_custom_call.1} parent=5 // pred_check
        _
      $region38: #{tpu_custom_call.1} parent=5 // pred_check_branch
        %283 = sbr.rel (%p280) target = $region40
      $region39: #{tpu_custom_call.1} parent=5 // pred_region
        %s284 = ssub.s32 %s24, 1
        %s285 = sand.u32 %s93, 1
        %s286 = scalar_lea.sflag [#allocation6], %s285
        %s287 = sand.u32 %s93, 1
        %s288 = smul.addr %s287, 8
        %s289 = scalar_lea.vmem [#allocation5], %s288
        // Predicated region
        $region41: #{tpu_custom_call.1} parent=39 // pred_check
          %p290 = pneg %p106
        $region42: #{tpu_custom_call.1} parent=39 // pred_check_branch
          %292 = sbr.rel (%p290) target = $region44
        $region43: #{tpu_custom_call.1} parent=39 // pred_region
          %293 = dma.done %s286, 128
        $region44: #{tpu_custom_call.1} parent=39 // pred_fallthru
          _
        %s294 = sand.u32 %s145, 1
        %s295 = scalar_lea.sflag [#allocation9], %s294
        %s296 = sand.u32 %s145, 1
        %s297 = smul.addr %s296, 8
        %s298 = scalar_lea.vmem [#allocation8], %s297
        // Predicated region
        $region45: #{tpu_custom_call.1} parent=39 // pred_check
          %p299 = pneg %p158
        $region46: #{tpu_custom_call.1} parent=39 // pred_check_branch
          %301 = sbr.rel (%p299) target = $region48
        $region47: #{tpu_custom_call.1} parent=39 // pred_region
          %302 = dma.done %s295, 128
        $region48: #{tpu_custom_call.1} parent=39 // pred_fallthru
          _
        %p303 = pneg %p57
        %p304 = pneg %p54
        %p305 = pneg %p78
        %p306 = pneg %p75
        %s307 = sand.u32 %s93, 1
        %s308 = scalar_lea.sflag [#allocation6], %s307
        %s309 = sand.u32 %s93, 1
        %s310 = smul.addr %s309, 8
        %s311 = scalar_lea.vmem [#allocation5], %s310
        %p312 = pneg %p106
        %p313 = pneg %p103
        %p314 = scmp.lt.s32.totalorder %s34, 0
        %s315 = scalar_select %p314, %s34, 0
        %s316 = scalar_lea.vmem %s3, %s315
        %p317 = pneg %p132
        %p318 = pneg %p129
        %s319 = sand.u32 %s145, 1
        %s320 = scalar_lea.sflag [#allocation9], %s319
        %s321 = sand.u32 %s145, 1
        %s322 = smul.addr %s321, 8
        %s323 = scalar_lea.vmem [#allocation8], %s322
        %p324 = pneg %p158
        %p325 = pneg %p155
        %p326 = pneg %p184
        %p327 = pneg %p181
        %s328 = sand.u32 %s171, 1
        %s329 = scalar_lea.sflag [#allocation7], %s328
        %s330 = sand.u32 %s171, 1
        %s331 = smul.addr %s330, 8
        %s332 = scalar_lea.vmem [#allocation10], %s331
        %p333 = pneg %p210
        %p334 = pneg %p207
        %p335 = scmp.lt.s32.totalorder %s33, 1
        %s336 = scalar_select %p335, %s33, 1
        %s337 = smul.addr %s336, 8
        %s338 = scalar_lea.vmem %s6, %s337
        %p339 = scmp.lt.s32.totalorder %s34, 0
        %s340 = scalar_select %p339, %s34, 0
        %s341 = scalar_lea.vmem %s3, %s340
        %p342 = scmp.lt.s32.totalorder %s33, 1
        %s343 = scalar_select %p342, %s33, 1
        %s344 = smul.addr %s343, 8
        %s345 = scalar_lea.vmem %s6, %s344
        %s346 = sld [smem:[#allocation3]]
        %s347 = smul.u32 %s34, 128
        %p348 = scmp.eq.s32.totalorder %s34, 0
        // Predicated region
        $region49: #{tpu_custom_call.1} parent=39 // pred_check
          %p349 = pneg %p348
        $region50: #{tpu_custom_call.1} parent=39 // pred_check_branch
          %351 = sbr.rel (%p349) target = $region52
        $region51: #{tpu_custom_call.1} parent=39 // pred_region
          %352 = vst [vmem:[#allocation2] sm:$0xff] 0.0
        $region52: #{tpu_custom_call.1} parent=39 // pred_fallthru
          _
        %s353 = sadd.s32 %s347, 128
        %p354 = scmp.gt.s32.totalorder %s353, %s346
        %p355 = scmp.le.s32.totalorder %s353, %s346
        // Predicated region
        $region53: #{tpu_custom_call.1} parent=39 // pred_check
          %p356 = pneg %p355
        $region54: #{tpu_custom_call.1} parent=39 // pred_check_branch
          %358 = sbr.rel (%p356) target = $region56
        $region55: #{tpu_custom_call.1} parent=39 // pred_region
          %v359 = vld [vmem:[#allocation2] sm:$0xff]
          %v360 = vld [vmem:[%s289] sm:$0xff]
          %v361 = vld [vmem:[%s341] sm:$0x1]
          %v363 = vlaneseq
          %v364 = vshrl.u32 %v363, 7
          %v365 = vsub.s32 0, %v364
          %v366 = vrot.slane %v361, %v365
          %v368 = vmul.f32 %v360, %v366
          %v369 = vadd.f32 %v359, %v368
          %370 = vst [vmem:[#allocation2] sm:$0xff] %v369
        $region56: #{tpu_custom_call.1} parent=39 // pred_fallthru
          _
        // Predicated region
        $region57: #{tpu_custom_call.1} parent=39 // pred_check
          %p371 = pneg %p354
        $region58: #{tpu_custom_call.1} parent=39 // pred_check_branch
          %373 = sbr.rel (%p371) target = $region60
        $region59: #{tpu_custom_call.1} parent=39 // pred_region
          %v374 = vld [vmem:[#allocation2] sm:$0xff]
          %v375 = vld [vmem:[%s289] sm:$0xff]
          %v376 = vld [vmem:[%s341] sm:$0x1]
          %v378 = vlaneseq
          %v379 = vshrl.u32 %v378, 7
          %v380 = vsub.s32 0, %v379
          %v381 = vrot.slane %v376, %v380
          %v383 = vmul.f32 %v375, %v381
          %v384 = vlaneseq
          %v385 = vand.u32 %v384, 127
          %v386 = vstv %s347
          %v387 = vadd.s32 %v386, %v385
          %v388 = vstv %s346
          %vm389 = vcmp.lt.s32.totalorder %v387, %v388
          %v390 = vsel %vm389, 1, 0
          %vm391 = vcmp.eq.s32.totalorder %v390, 1
          %v392 = vsel %vm391, %v383, 0.0
          %v393 = vadd.f32 %v374, %v392
          %394 = vst [vmem:[#allocation2] sm:$0xff] %v393
        $region60: #{tpu_custom_call.1} parent=39 // pred_fallthru
          _
        // Predicated region
        $region61: #{tpu_custom_call.1} parent=39 // pred_check
          %p395 = pneg %p348
        $region62: #{tpu_custom_call.1} parent=39 // pred_check_branch
          %397 = sbr.rel (%p395) target = $region64
        $region63: #{tpu_custom_call.1} parent=39 // pred_region
          %v398 = vld [vmem:[#allocation2] sm:$0xff]
          %399 = vadd.xlane.f32.xlu0 %v398
          %v400 = vpop.xlane.xlu0 %399
          %s401 = sld [smem:[#allocation4]]
          %v402 = vstv %s401
          %v403 = vadd.f32 %v400, %v402
          %v404 = vtanh.pop %v403
          %vm405 = vcmask 7168
          %406 = vst.msk [vmem:[%s345] sm:$0xff] %vm405, %v404
          %v407 = vld [vmem:[%s298] sm:$0xff]
          %v408 = vmul.f32 %v407, %v404
          %vm409 = vcmask 261120
          %410 = vst.msk [vmem:[%s332] sm:$0xff] %vm409, %v408
        $region64: #{tpu_custom_call.1} parent=39 // pred_fallthru
          _
        %s411 = sand.u32 %s171, 1
        %s412 = scalar_lea.sflag [#allocation7], %s411
        %s413 = sand.u32 %s171, 1
        %s414 = smul.addr %s413, 8
        %s415 = scalar_lea.vmem [#allocation10], %s414
        %p416 = scmp.lt.s32.totalorder %s33, 1
        %s417 = scalar_select %p416, %s33, 1
        %s418 = smul.addr %s417, 8
        %s419 = scalar_lea.vmem %s6, %s418
        // Predicated region
        $region65: #{tpu_custom_call.1} parent=39 // pred_check
          %p420 = pneg %p181
        $region66: #{tpu_custom_call.1} parent=39 // pred_check_branch
          %422 = sbr.rel (%p420) target = $region68
        $region67: #{tpu_custom_call.1} parent=39 // pred_region
          %s424 = ssub.s32 128, 128
          %425 = vsyncadd %s412, %s424
          %s426 = smul.addr %s33, 128
          %s427 = scalar_lea.hbm %s5, %s426
          %s429 = sshll.u32 %s415, 4
          %s430 = int_to_ptr.vmem [resolvable:$true] %s429
          %432 = dma.vmem_to_hbm [thread:$0]  %s430, 128, %s427, %s412
        $region68: #{tpu_custom_call.1} parent=39 // pred_fallthru
          _
        // Predicated region
        $region69: #{tpu_custom_call.1} parent=39 // pred_check
          %p433 = pneg %p207
        $region70: #{tpu_custom_call.1} parent=39 // pred_check_branch
          %435 = sbr.rel (%p433) target = $region72
        $region71: #{tpu_custom_call.1} parent=39 // pred_region
          _
        $region72: #{tpu_custom_call.1} parent=39 // pred_fallthru
          _
      $region40: #{tpu_custom_call.1} parent=5 // pred_fallthru
        _
      %p436 = scmp.le.s32.totalorder 2, %s24
      // Predicated region
      $region73: #{tpu_custom_call.1} parent=5 // pred_check
        %p437 = pneg %p436
      $region74: #{tpu_custom_call.1} parent=5 // pred_check_branch
        %439 = sbr.rel (%p437) target = $region76
      $region75: #{tpu_custom_call.1} parent=5 // pred_region
        %s440 = ssub.s32 %s24, 2
        // Predicated region
        $region77: #{tpu_custom_call.1} parent=75 // pred_check
          %p441 = pneg %p187
        $region78: #{tpu_custom_call.1} parent=75 // pred_check_branch
          %443 = sbr.rel (%p441) target = $region80
        $region79: #{tpu_custom_call.1} parent=75 // pred_region
          %s444 = sand.u32 %s172, 1
          %s445 = scalar_lea.sflag [#allocation7], %s444
          %s446 = sand.u32 %s172, 1
          %s447 = smul.addr %s446, 8
          %s448 = scalar_lea.vmem [#allocation10], %s447
          %449 = dma.done %s445, 128
        $region80: #{tpu_custom_call.1} parent=75 // pred_fallthru
          _
        // Predicated region
        $region81: #{tpu_custom_call.1} parent=75 // pred_check
          %p450 = pneg %p213
        $region82: #{tpu_custom_call.1} parent=75 // pred_check_branch
          %452 = sbr.rel (%p450) target = $region84
        $region83: #{tpu_custom_call.1} parent=75 // pred_region
          %p453 = scmp.lt.s32.totalorder %s35, 1
          %s454 = scalar_select %p453, %s35, 1
          %s455 = smul.addr %s454, 8
          %s456 = scalar_lea.vmem %s6, %s455
        $region84: #{tpu_custom_call.1} parent=75 // pred_fallthru
          _
      $region76: #{tpu_custom_call.1} parent=5 // pred_fallthru
        _
    $region6: #{tpu_custom_call.1} parent=1 // loop_footer
      %s28 = sadd.s32 1, %s24
    $region7: #{tpu_custom_call.1} parent=1 // loop_footer_branch
      %23 = sbr.rel target = $region3
    $region8: #{tpu_custom_call.1} parent=1 // loop_exit
      _
    %457 = vsyncpa [#allocation6], 1
    %s458 = scalar_lea.sflag [#allocation6], 1
    %459 = vsyncpa %s458, 1
    %460 = vsyncpa [#allocation9], 1
    %s461 = scalar_lea.sflag [#allocation9], 1
    %462 = vsyncpa %s461, 1
    %463 = vsyncpa [#allocation7], 1
    %s464 = scalar_lea.sflag [#allocation7], 1
    %465 = vsyncpa %s464, 1

</llo_original>
